<compile_context>
chip_gen: v7x
topology: tpu7x:2x2x1
jax: 0.10.0
libtpu: 0.0.40
codegen_flags: <defaults>
</compile_context>

<pallas_src>
import functools

import jax
import jax.numpy as jnp
from jax.experimental import pallas as pl
from jax.experimental.pallas import tpu as pltpu

HIDDEN = 100        # logical hidden width (nn.Linear(1, 100))
HIDDEN_PAD = 128    # padded to one full 128-lane vreg (exact: ReLU(0)=0)
K_AUG = 8           # bias-augmented layer-1 contraction width ([x, 1, 0*6])


def _round_up(n, m):
    return (n + m - 1) // m * m


def mlp_kernel(xa_ref, w1a_ref, w2_ref, b2_ref, w3m_ref, b3_ref, o_ref):
    mm_dtype = w2_ref.dtype

    # Layer 1 (bias-augmented, MXU): [x, 1, 0..0] @ [[w1], [b1], 0..0]
    xa = xa_ref[...].astype(mm_dtype)                                   # (TB, 8)
    h1 = jnp.dot(xa, w1a_ref[...], preferred_element_type=jnp.float32)  # (TB, 128)
    h1 = jnp.maximum(h1, 0.0)

    # Layer 2 (main matmul, MXU): (TB,128) @ (128,128), f32 accumulate.
    h2 = jnp.dot(h1.astype(mm_dtype), w2_ref[...],
                 preferred_element_type=jnp.float32)
    h2 = jnp.maximum(h2 + b2_ref[...], 0.0)                             # (TB, 128)

    # Layer 3 (MXU instead of a 128-lane XLU reduce): w3 lives in column 0
    # of a (128,128) matrix; take lane 0 of the result.
    o128 = jnp.dot(h2.astype(mm_dtype), w3m_ref[...],
                   preferred_element_type=jnp.float32)                  # (TB, 128)
    o = o128[:, :1] + b3_ref[...]                                       # (TB, 1)
    o_ref[...] = o.astype(o_ref.dtype)


def prepare_params(w1, b1, w2, b2, w3, b3, matmul_dtype=jnp.bfloat16):
    """Pad / cast weights once (hoisted out of the per-call forward).

    Inputs are PyTorch-equivalent but pre-transposed to (in, out):
      w1 (1,100), b1 (100,), w2 (100,100), b2 (100,), w3 (100,1), b3 (1,).
    """
    f32 = jnp.float32
    pad_h = HIDDEN_PAD - HIDDEN

    # Layer 1 bias-augmented operand: rows = [w1; b1; zeros], cols padded 100->128.
    w1a = jnp.concatenate([w1.astype(f32), b1.astype(f32).reshape(1, -1)], axis=0)
    w1a = jnp.pad(w1a, ((0, K_AUG - 2), (0, pad_h))).astype(matmul_dtype)      # (8, 128)

    w2p = jnp.pad(w2.astype(f32), ((0, pad_h), (0, pad_h))).astype(matmul_dtype)  # (128,128)
    b2p = jnp.pad(b2.astype(f32).reshape(1, -1), ((0, 0), (0, pad_h)))            # (1,128) f32

    # Layer 3 as an MXU matrix: w3 in column 0, everything else zero.
    w3m = jnp.pad(w3.astype(f32),
                  ((0, pad_h), (0, HIDDEN_PAD - 1))).astype(matmul_dtype)         # (128,128)
    b3p = b3.astype(f32).reshape(1, 1)                                            # (1,1) f32
    return w1a, w2p, b2p, w3m, b3p


def _augment_input(x):
    """x (B,1) f32 -> [x, 1, 0, ..., 0] (B, K_AUG) for the bias-augmented layer 1."""
    x = x.astype(jnp.float32)
    xa = jnp.concatenate([x, jnp.ones_like(x)], axis=1)
    return jnp.pad(xa, ((0, 0), (0, K_AUG - 2)))


@functools.partial(jax.jit, static_argnames=("tb",))
def mlp_forward(x, params, *, tb=2048):
    """Forward pass. `params` comes from prepare_params()."""
    w1a, w2p, b2p, w3m, b3p = params
    B = x.shape[0]
    xa = _augment_input(x)                                   # (B, 8) f32

    # Batch tiling: multiple of 8 sublanes; keep >= 2 tiles for large batches
    # so both v7x TensorCores get work under dimension_semantics=("parallel",).
    bp8 = _round_up(B, 8)
    half = _round_up(max(bp8 // 2, 8), 8)
    tb = max(8, min(tb, half))
    bp = _round_up(B, tb)
    xa = jnp.pad(xa, ((0, bp - B), (0, 0)))                  # zero rows, discarded later

    const = lambda shape: pl.BlockSpec(shape, lambda i: (0,) * len(shape))

    out = pl.pallas_call(
        mlp_kernel,
        out_shape=jax.ShapeDtypeStruct((bp, 1), jnp.float32),
        grid_spec=pltpu.PrefetchScalarGridSpec(
            num_scalar_prefetch=0,
            grid=(bp // tb,),
            in_specs=[
                pl.BlockSpec((tb, K_AUG), lambda i: (i, 0)),   # xa: streamed per tile
                const((K_AUG, HIDDEN_PAD)),                    # w1a  (VMEM-resident)
                const((HIDDEN_PAD, HIDDEN_PAD)),               # w2
                const((1, HIDDEN_PAD)),                        # b2
                const((HIDDEN_PAD, HIDDEN_PAD)),               # w3 (as matrix, col 0)
                const((1, 1)),                                 # b3
            ],
            out_specs=pl.BlockSpec((tb, 1), lambda i: (i, 0)),
        ),
        compiler_params=pltpu.CompilerParams(
            dimension_semantics=("parallel",),                 # shard batch tiles across TCs
        ),
    )(xa, w1a, w2p, b2p, w3m, b3p)
    return out[:B]


def init_params(key):
    """Deterministic init mimicking PyTorch Linear default (uniform +/- 1/sqrt(fan_in)).
    Weights stored transposed: (in_features, out_features); biases 1-D."""
    ks = jax.random.split(key, 6)

    def linear(kw, kb, fan_in, fan_out):
        bound = 1.0 / jnp.sqrt(fan_in)
        w = jax.random.uniform(kw, (fan_in, fan_out), jnp.float32, -bound, bound)
        b = jax.random.uniform(kb, (fan_out,), jnp.float32, -bound, bound)
        return w, b

    w1, b1 = linear(ks[0], ks[1], 1, HIDDEN)
    w2, b2 = linear(ks[2], ks[3], HIDDEN, HIDDEN)
    w3, b3 = linear(ks[4], ks[5], HIDDEN, 1)
    return w1, b1, w2, b2, w3, b3


def _jax_reference_from_prepped(x, params):
    """Plain-JAX mirror of the kernel math (same padded/cast operands)."""
    w1a, w2p, b2p, w3m, b3p = params
    dt = w2p.dtype
    xa = _augment_input(x)
    h1 = jnp.maximum(jnp.dot(xa.astype(dt), w1a,
                             preferred_element_type=jnp.float32), 0.0)
    h2 = jnp.maximum(jnp.dot(h1.astype(dt), w2p,
                             preferred_element_type=jnp.float32) + b2p, 0.0)
    return jnp.dot(h2.astype(dt), w3m,
                   preferred_element_type=jnp.float32)[:, :1] + b3p


if __name__ == "__main__":
    key = jax.random.PRNGKey(0)
    k_x, k_p = jax.random.split(key)

    B = 8
    x = jax.random.normal(k_x, (B, 1), jnp.float32)
    w1, b1, w2, b2, w3, b3 = init_params(k_p)

    # Pure f32 reference (matches PyTorch forward semantics).
    h1 = jnp.maximum(x @ w1 + b1[None, :], 0.0)
    h2 = jnp.maximum(h1 @ w2 + b2[None, :], 0.0)
    ref_f32 = h2 @ w3 + b3[None, :]

    # --- exact f32 mode: verify kernel structure against the reference ---
    params_f32 = prepare_params(w1, b1, w2, b2, w3, b3, matmul_dtype=jnp.float32)
    out_f32 = jax.block_until_ready(mlp_forward(x, params_f32))
    assert out_f32.shape == (B, 1)
    assert jnp.allclose(out_f32, ref_f32, atol=1e-4, rtol=1e-4)

    # --- default bf16-operand mode (fast path) ---
    params_bf16 = prepare_params(w1, b1, w2, b2, w3, b3)      # bf16 MXU operands
    out_bf16 = jax.block_until_ready(mlp_forward(x, params_bf16))
    assert out_bf16.shape == (B, 1)
    # Matched-precision reference (same bf16 operands, f32 accumulation).
    ref_bf16 = _jax_reference_from_prepped(x, params_bf16)
    assert jnp.allclose(out_bf16, ref_bf16, atol=1e-3, rtol=1e-3)
    # Loose sanity check vs. the true f32 model (bf16 rounding only).
    assert jnp.allclose(out_bf16, ref_f32, atol=0.5, rtol=0.25)

    print("KERNEL_OK")
</pallas_src>

<mosaic_0001>
module attributes {stable_mosaic.version = 11 : i64} {
  func.func @mlp_kernel(%arg0: i32, %arg1: memref<8x8xf32, #tpu.memory_space<vmem>>, %arg2: memref<8x128xf32, #tpu.memory_space<vmem>>, %arg3: memref<128x128xf32, #tpu.memory_space<vmem>>, %arg4: memref<1x128xf32, #tpu.memory_space<vmem>>, %arg5: memref<128x128xf32, #tpu.memory_space<vmem>>, %arg6: memref<1x1xf32, #tpu.memory_space<vmem>>, %arg7: memref<8x1xf32, #tpu.memory_space<vmem>>) attributes {dimension_semantics = [#tpu.dimension_semantics<parallel>], iteration_bounds = array<i64: 1>, scalar_prefetch = 0 : i64, scratch_operands = 0 : i64, tpu.core_type = #tpu.core_type<tc>, window_params = [{transform_indices = @transform_0, window_bounds = array<i64: 8, 8>}, {pipeline_mode = #tpu.pipeline_mode<synchronous>, transform_indices = @transform_1, window_bounds = array<i64: 8, 128>}, {pipeline_mode = #tpu.pipeline_mode<synchronous>, transform_indices = @transform_2, window_bounds = array<i64: 128, 128>}, {pipeline_mode = #tpu.pipeline_mode<synchronous>, transform_indices = @transform_3, window_bounds = array<i64: 1, 128>}, {pipeline_mode = #tpu.pipeline_mode<synchronous>, transform_indices = @transform_4, window_bounds = array<i64: 128, 128>}, {pipeline_mode = #tpu.pipeline_mode<synchronous>, transform_indices = @transform_5, window_bounds = array<i64: 1, 1>}, {transform_indices = @transform_6, window_bounds = array<i64: 8, 1>}]} {
    %c0 = arith.constant 0 : index
    %c0_0 = arith.constant 0 : index
    %0 = vector.load %arg1[%c0, %c0_0] : memref<8x8xf32, #tpu.memory_space<vmem>>, vector<8x8xf32>
    %c0_1 = arith.constant 0 : index
    %c0_2 = arith.constant 0 : index
    %1 = vector.load %arg2[%c0_1, %c0_2] : memref<8x128xf32, #tpu.memory_space<vmem>>, vector<8x128xf32>
    %cst = arith.constant dense<0.000000e+00> : vector<8x128xf32>
    %2 = tpu.matmul %0, %1, %cst {dimension_numbers = #tpu.dot_dimension_numbers<[1], [0], [0], [1], [0, 0, 1, 1], [], []>} : vector<8x8xf32>, vector<8x128xf32>, vector<8x128xf32> -> vector<8x128xf32>
    %cst_3 = arith.constant 0.000000e+00 : f32
    %3 = vector.broadcast %cst_3 : f32 to vector<8x128xf32>
    %4 = arith.maximumf %2, %3 : vector<8x128xf32>
    %c0_4 = arith.constant 0 : index
    %c0_5 = arith.constant 0 : index
    %5 = vector.load %arg3[%c0_4, %c0_5] : memref<128x128xf32, #tpu.memory_space<vmem>>, vector<128x128xf32>
    %cst_6 = arith.constant dense<0.000000e+00> : vector<8x128xf32>
    %6 = tpu.matmul %4, %5, %cst_6 {dimension_numbers = #tpu.dot_dimension_numbers<[1], [0], [0], [1], [0, 0, 1, 1], [], []>} : vector<8x128xf32>, vector<128x128xf32>, vector<8x128xf32> -> vector<8x128xf32>
    %c0_7 = arith.constant 0 : index
    %c0_8 = arith.constant 0 : index
    %7 = vector.load %arg4[%c0_7, %c0_8] : memref<1x128xf32, #tpu.memory_space<vmem>>, vector<1x128xf32>
    %8 = vector.broadcast %7 : vector<1x128xf32> to vector<8x128xf32>
    %9 = arith.addf %6, %8 : vector<8x128xf32>
    %cst_9 = arith.constant 0.000000e+00 : f32
    %10 = vector.broadcast %cst_9 : f32 to vector<8x128xf32>
    %11 = arith.maximumf %9, %10 : vector<8x128xf32>
    %c0_10 = arith.constant 0 : index
    %c0_11 = arith.constant 0 : index
    %12 = vector.load %arg5[%c0_10, %c0_11] : memref<128x128xf32, #tpu.memory_space<vmem>>, vector<128x128xf32>
    %cst_12 = arith.constant dense<0.000000e+00> : vector<8x128xf32>
    %13 = tpu.matmul %11, %12, %cst_12 {dimension_numbers = #tpu.dot_dimension_numbers<[1], [0], [0], [1], [0, 0, 1, 1], [], []>} : vector<8x128xf32>, vector<128x128xf32>, vector<8x128xf32> -> vector<8x128xf32>
    %14 = vector.extract_strided_slice %13 {offsets = [0, 0], sizes = [8, 1], strides = [1, 1]} : vector<8x128xf32> to vector<8x1xf32>
    %c0_13 = arith.constant 0 : index
    %c0_14 = arith.constant 0 : index
    %15 = vector.load %arg6[%c0_13, %c0_14] : memref<1x1xf32, #tpu.memory_space<vmem>>, vector<1x1xf32>
    %16 = vector.broadcast %15 : vector<1x1xf32> to vector<8x1xf32>
    %17 = arith.addf %14, %16 : vector<8x1xf32>
    %c0_15 = arith.constant 0 : index
    %c0_16 = arith.constant 0 : index
    %18 = vector.load %arg7[%c0_15, %c0_16] : memref<8x1xf32, #tpu.memory_space<vmem>>, vector<8x1xf32>
    tpu.vector_store %arg7[%c0_15, %c0_16], %17 {strides = array<i32>} : memref<8x1xf32, #tpu.memory_space<vmem>>, vector<8x1xf32>,
    return
  }
  func.func @transform_0(%arg0: i32) -> (i32, i32) {
    %c0_i32 = arith.constant 0 : i32
    %c0_i32_0 = arith.constant 0 : i32
    return %arg0, %c0_i32 : i32, i32
  }
  func.func @transform_1(%arg0: i32) -> (i32, i32) {
    %c0_i32 = arith.constant 0 : i32
    %c0_i32_0 = arith.constant 0 : i32
    %c0_i32_1 = arith.constant 0 : i32
    return %c0_i32, %c0_i32_0 : i32, i32
  }
  func.func @transform_2(%arg0: i32) -> (i32, i32) {
    %c0_i32 = arith.constant 0 : i32
    %c0_i32_0 = arith.constant 0 : i32
    %c0_i32_1 = arith.constant 0 : i32
    return %c0_i32, %c0_i32_0 : i32, i32
  }
  func.func @transform_3(%arg0: i32) -> (i32, i32) {
    %c0_i32 = arith.constant 0 : i32
    %c0_i32_0 = arith.constant 0 : i32
    %c0_i32_1 = arith.constant 0 : i32
    return %c0_i32, %c0_i32_0 : i32, i32
  }
  func.func @transform_4(%arg0: i32) -> (i32, i32) {
    %c0_i32 = arith.constant 0 : i32
    %c0_i32_0 = arith.constant 0 : i32
    %c0_i32_1 = arith.constant 0 : i32
    return %c0_i32, %c0_i32_0 : i32, i32
  }
  func.func @transform_5(%arg0: i32) -> (i32, i32) {
    %c0_i32 = arith.constant 0 : i32
    %c0_i32_0 = arith.constant 0 : i32
    %c0_i32_1 = arith.constant 0 : i32
    return %c0_i32, %c0_i32_0 : i32, i32
  }
  func.func @transform_6(%arg0: i32) -> (i32, i32) {
    %c0_i32 = arith.constant 0 : i32
    %c0_i32_0 = arith.constant 0 : i32
    return %arg0, %c0_i32 : i32, i32
  }
}

</mosaic_0001>

<llo_original>
// kernel: mlp_forward.1
$region0: #{mlp_forward.1}
  #allocation0 [shape = 'u32[]', space=smem, size = 0x4, offset = 0x4, fixed_abs, tag = 'smem constant byte address 0x4 - core index']
  #allocation1 [shape = 'u32[144,128]{1,0:T(1,128)}', space=vmem, size = 0x12000, scoped, tag = 'internal scratch']
  #allocation2 [shape = 'f32[1,1]{1,0:T(1,128)S(1)}', space=vmem, size = 0x200, scoped, tag = 'scoped memory for mlp_forward.1']
  %s0 = inlined_call_operand.vmem [shape: f32[8,8], index: 0, kind: input, shape index: {}]
  %s1 = inlined_call_operand.vmem [shape: f32[8,128], index: 1, kind: input, shape index: {}]
  %s2 = inlined_call_operand.hbm [shape: f32[128,128], index: 2, kind: input, shape index: {}]
  %s3 = inlined_call_operand.vmem [shape: f32[1,128], index: 3, kind: input, shape index: {}]
  %s4 = inlined_call_operand.hbm [shape: f32[128,128], index: 4, kind: input, shape index: {}]
  %s5 = inlined_call_operand.<no memory space> [shape: f32[1,1], index: 5, kind: input, shape index: {}]
  %s6 = inlined_call_operand.vmem [shape: f32[8,1], index: 6, kind: output, shape index: {}]
  %s7 = sld [smem:[#allocation0]]
  $region42: #{mlp_forward.1} parent=0
    _
  %s9 = ssub.s32 1, %s7
  %s10 = scalar_select 0, %s9, %s7
  %v11 = vstv %s5
  %12 = vst [vmem:[#allocation2] sm:$0x1] %v11
  $region1: #{mlp_forward.1} parent=0
    #allocation3 [shape = 'u8[65536]{0}', space=vmem, size = 0x10000, scoped, tag = 'input window, operand 2, single buffered']
    #allocation4 [shape = 's32[1]{0}', space=sflag, size = 0x4, scoped, tag = 'scoped memory for mlp_forward.1']
    #allocation5 [shape = 'u8[65536]{0}', space=vmem, size = 0x10000, scoped, tag = 'input window, operand 4, single buffered']
    #allocation6 [shape = 's32[1]{0}', space=sflag, size = 0x4, scoped, tag = 'scoped memory for mlp_forward.1']
    %13 = vsyncpa [#allocation4], 0
    %14 = vsyncpa [#allocation6], 0
    // Predicated region
    $region2: #{mlp_forward.1} parent=1 // pred_check
      _
    $region3: #{mlp_forward.1} parent=1 // pred_check_branch
      %16 = sbr.rel (0) target = $region5
    $region4: #{mlp_forward.1} parent=1 // pred_region
      _
    $region5: #{mlp_forward.1} parent=1 // pred_fallthru
      _
    // Predicated region
    $region6: #{mlp_forward.1} parent=1 // pred_check
      _
    $region7: #{mlp_forward.1} parent=1 // pred_check_branch
      %18 = sbr.rel (0) target = $region9
    $region8: #{mlp_forward.1} parent=1 // pred_region
      _
    $region9: #{mlp_forward.1} parent=1 // pred_fallthru
      _
    // Predicated region
    $region10: #{mlp_forward.1} parent=1 // pred_check
      _
    $region11: #{mlp_forward.1} parent=1 // pred_check_branch
      %20 = sbr.rel (0) target = $region13
    $region12: #{mlp_forward.1} parent=1 // pred_region
      %s22 = ssub.s32 2048, 2048
      %23 = vsyncadd [#allocation4], %s22
      %s24 = sshll.u32 [#allocation3], 4
      %s25 = int_to_ptr.vmem [resolvable:$true] %s24
      %30 = dma.hbm_to_vmem [thread:$0]  %s2, 2048, %s25, [#allocation4], 128, 128, 8
    $region13: #{mlp_forward.1} parent=1 // pred_fallthru
      _
    // Predicated region
    $region14: #{mlp_forward.1} parent=1 // pred_check
      _
    $region15: #{mlp_forward.1} parent=1 // pred_check_branch
      %32 = sbr.rel (0) target = $region17
    $region16: #{mlp_forward.1} parent=1 // pred_region
      _
    $region17: #{mlp_forward.1} parent=1 // pred_fallthru
      _
    // Predicated region
    $region18: #{mlp_forward.1} parent=1 // pred_check
      _
    $region19: #{mlp_forward.1} parent=1 // pred_check_branch
      %34 = sbr.rel (0) target = $region21
    $region20: #{mlp_forward.1} parent=1 // pred_region
      %s36 = ssub.s32 2048, 2048
      %37 = vsyncadd [#allocation6], %s36
      %s38 = sshll.u32 [#allocation5], 4
      %s39 = int_to_ptr.vmem [resolvable:$true] %s38
      %44 = dma.hbm_to_vmem [thread:$0]  %s4, 2048, %s39, [#allocation6], 128, 128, 8
    $region21: #{mlp_forward.1} parent=1 // pred_fallthru
      _
    // Predicated region
    $region22: #{mlp_forward.1} parent=1 // pred_check
      _
    $region23: #{mlp_forward.1} parent=1 // pred_check_branch
      %46 = sbr.rel (0) target = $region25
    $region24: #{mlp_forward.1} parent=1 // pred_region
      _
    $region25: #{mlp_forward.1} parent=1 // pred_fallthru
      _
    // Predicated region
    $region26: #{mlp_forward.1} parent=1 // pred_check
      _
    $region27: #{mlp_forward.1} parent=1 // pred_check_branch
      %48 = sbr.rel (0) target = $region29
    $region28: #{mlp_forward.1} parent=1 // pred_region
      %49 = dma.done [#allocation4], 2048
    $region29: #{mlp_forward.1} parent=1 // pred_fallthru
      _
    // Predicated region
    $region30: #{mlp_forward.1} parent=1 // pred_check
      _
    $region31: #{mlp_forward.1} parent=1 // pred_check_branch
      %51 = sbr.rel (0) target = $region33
    $region32: #{mlp_forward.1} parent=1 // pred_region
      %52 = dma.done [#allocation6], 2048
    $region33: #{mlp_forward.1} parent=1 // pred_fallthru
      _
    %v53 = vld [vmem:[%s0] sm:$0xff]
    %v54 = vld [vmem:[%s1] sm:$0xff]
    %vm55 = vcmask 64512
    %v57 = vsel %vm55, %v53, 0
    %59 = vmatprep.subr.mxu0 0.0
    %60 = vmatpush1.msra.mxu0 %v54
    %61 = vmatprep.subr.mxu0 0.0
    %62 = vmatpush1.msra.mxu0 0.0
    %63 = vmatprep.subr.mxu0 0.0
    %64 = vmatpush1.msra.mxu0 0.0
    %65 = vmatprep.subr.mxu0 0.0
    %66 = vmatpush1.msra.mxu0 0.0
    %67 = vmatprep.subr.mxu0 0.0
    %68 = vmatpush1.msra.mxu0 0.0
    %69 = vmatprep.subr.mxu0 0.0
    %70 = vmatpush1.msra.mxu0 0.0
    %71 = vmatprep.subr.mxu0 0.0
    %72 = vmatpush1.msra.mxu0 0.0
    %73 = vmatprep.subr.mxu0 0.0
    %74 = vmatpush1.msra.mxu0 0.0
    %75 = vmatprep.subr.mxu0 0.0
    %76 = vmatpush1.msra.mxu0 0.0
    %77 = vmatprep.subr.mxu0 0.0
    %78 = vmatpush1.msra.mxu0 0.0
    %79 = vmatprep.subr.mxu0 0.0
    %80 = vmatpush1.msra.mxu0 0.0
    %81 = vmatprep.subr.mxu0 0.0
    %82 = vmatpush1.msra.mxu0 0.0
    %83 = vmatprep.subr.mxu0 0.0
    %84 = vmatpush1.msra.mxu0 0.0
    %85 = vmatprep.subr.mxu0 0.0
    %86 = vmatpush1.msra.mxu0 0.0
    %87 = vmatprep.subr.mxu0 0.0
    %88 = vmatpush1.msra.mxu0 0.0
    %89 = vmatprep.subr.mxu0 0.0
    %90 = vmatpush1.msra.mxu0 0.0
    %91 = vmatprep.subr.mxu0 0.0
    %92 = vmatpush1.msra.mxu0 0.0
    %93 = vmatprep.subr.mxu0 0.0
    %94 = vmatpush1.msra.mxu0 0.0
    %95 = vmatprep.subr.mxu0 0.0
    %96 = vmatpush1.msra.mxu0 0.0
    %97 = vmatprep.subr.mxu0 0.0
    %98 = vmatpush1.msra.mxu0 0.0
    %99 = vmatprep.subr.mxu0 0.0
    %100 = vmatpush1.msra.mxu0 0.0
    %101 = vmatprep.subr.mxu0 0.0
    %102 = vmatpush1.msra.mxu0 0.0
    %103 = vmatprep.subr.mxu0 0.0
    %104 = vmatpush1.msra.mxu0 0.0
    %105 = vmatprep.subr.mxu0 0.0
    %106 = vmatpush1.msra.mxu0 0.0
    %107 = vmatprep.subr.mxu0 0.0
    %108 = vmatpush1.msra.mxu0 0.0
    %109 = vmatprep.subr.mxu0 0.0
    %110 = vmatpush1.msra.mxu0 0.0
    %111 = vmatprep.subr.mxu0 0.0
    %112 = vmatpush1.msra.mxu0 0.0
    %113 = vmatprep.subr.mxu0 0.0
    %114 = vmatpush1.msra.mxu0 0.0
    %115 = vmatprep.subr.mxu0 0.0
    %116 = vmatpush1.msra.mxu0 0.0
    %117 = vmatprep.subr.mxu0 0.0
    %118 = vmatpush1.msra.mxu0 0.0
    %119 = vmatprep.subr.mxu0 0.0
    %120 = vmatpush1.msra.mxu0 0.0
    %121 = vmatprep.subr.mxu0 0.0
    %122 = vmatpush1.msra.mxu0 0.0
    %123 = vmatprep.mubr.f32.mxu0 0.0
    %124 = vmatmul.mubr.f32.gmra.mrb[0].mxu0 %v57
    %v125 = vpop.f32.mrb[0].mxu0
    %v126 = vadd.f32 0.0, %v125
    %v127 = vpop.f32.mrb[0].mxu0
    %128 = vdwg.mxu0
    %v129 = vmax.f32 %v126, 0.0
    %v130 = vld [vmem:[#allocation3] sm:$0xff]
    %v131 = vld [vmem:[#allocation3 + $0x8] sm:$0xff]
    %v132 = vld [vmem:[#allocation3 + $0x10] sm:$0xff]
    %v133 = vld [vmem:[#allocation3 + $0x18] sm:$0xff]
    %v134 = vld [vmem:[#allocation3 + $0x20] sm:$0xff]
    %v135 = vld [vmem:[#allocation3 + $0x28] sm:$0xff]
    %v136 = vld [vmem:[#allocation3 + $0x30] sm:$0xff]
    %v137 = vld [vmem:[#allocation3 + $0x38] sm:$0xff]
    %v138 = vld [vmem:[#allocation3 + $0x40] sm:$0xff]
    %v139 = vld [vmem:[#allocation3 + $0x48] sm:$0xff]
    %v140 = vld [vmem:[#allocation3 + $0x50] sm:$0xff]
    %v141 = vld [vmem:[#allocation3 + $0x58] sm:$0xff]
    %v142 = vld [vmem:[#allocation3 + $0x60] sm:$0xff]
    %v143 = vld [vmem:[#allocation3 + $0x68] sm:$0xff]
    %v144 = vld [vmem:[#allocation3 + $0x70] sm:$0xff]
    %v145 = vld [vmem:[#allocation3 + $0x78] sm:$0xff]
    %v146 = vld [vmem:[%s3] sm:$0x1]
    %v148 = vlaneseq
    %v149 = vshrl.u32 %v148, 7
    %v150 = vsub.s32 0, %v149
    %v151 = vrot.slane %v146, %v150
    %153 = vmatprep.subr.mxu0 0.0
    %154 = vmatpush1.msra.mxu0 %v130
    %155 = vmatprep.subr.mxu0 0.0
    %156 = vmatpush1.msra.mxu0 %v131
    %157 = vmatprep.subr.mxu0 0.0
    %158 = vmatpush1.msra.mxu0 %v132
    %159 = vmatprep.subr.mxu0 0.0
    %160 = vmatpush1.msra.mxu0 %v133
    %161 = vmatprep.subr.mxu0 0.0
    %162 = vmatpush1.msra.mxu0 %v134
    %163 = vmatprep.subr.mxu0 0.0
    %164 = vmatpush1.msra.mxu0 %v135
    %165 = vmatprep.subr.mxu0 0.0
    %166 = vmatpush1.msra.mxu0 %v136
    %167 = vmatprep.subr.mxu0 0.0
    %168 = vmatpush1.msra.mxu0 %v137
    %169 = vmatprep.subr.mxu0 0.0
    %170 = vmatpush1.msra.mxu0 %v138
    %171 = vmatprep.subr.mxu0 0.0
    %172 = vmatpush1.msra.mxu0 %v139
    %173 = vmatprep.subr.mxu0 0.0
    %174 = vmatpush1.msra.mxu0 %v140
    %175 = vmatprep.subr.mxu0 0.0
    %176 = vmatpush1.msra.mxu0 %v141
    %177 = vmatprep.subr.mxu0 0.0
    %178 = vmatpush1.msra.mxu0 %v142
    %179 = vmatprep.subr.mxu0 0.0
    %180 = vmatpush1.msra.mxu0 %v143
    %181 = vmatprep.subr.mxu0 0.0
    %182 = vmatpush1.msra.mxu0 %v144
    %183 = vmatprep.subr.mxu0 0.0
    %184 = vmatpush1.msra.mxu0 %v145
    %185 = vmatprep.subr.mxu0 0.0
    %186 = vmatpush1.msra.mxu0 0.0
    %187 = vmatprep.subr.mxu0 0.0
    %188 = vmatpush1.msra.mxu0 0.0
    %189 = vmatprep.subr.mxu0 0.0
    %190 = vmatpush1.msra.mxu0 0.0
    %191 = vmatprep.subr.mxu0 0.0
    %192 = vmatpush1.msra.mxu0 0.0
    %193 = vmatprep.subr.mxu0 0.0
    %194 = vmatpush1.msra.mxu0 0.0
    %195 = vmatprep.subr.mxu0 0.0
    %196 = vmatpush1.msra.mxu0 0.0
    %197 = vmatprep.subr.mxu0 0.0
    %198 = vmatpush1.msra.mxu0 0.0
    %199 = vmatprep.subr.mxu0 0.0
    %200 = vmatpush1.msra.mxu0 0.0
    %201 = vmatprep.subr.mxu0 0.0
    %202 = vmatpush1.msra.mxu0 0.0
    %203 = vmatprep.subr.mxu0 0.0
    %204 = vmatpush1.msra.mxu0 0.0
    %205 = vmatprep.subr.mxu0 0.0
    %206 = vmatpush1.msra.mxu0 0.0
    %207 = vmatprep.subr.mxu0 0.0
    %208 = vmatpush1.msra.mxu0 0.0
    %209 = vmatprep.subr.mxu0 0.0
    %210 = vmatpush1.msra.mxu0 0.0
    %211 = vmatprep.subr.mxu0 0.0
    %212 = vmatpush1.msra.mxu0 0.0
    %213 = vmatprep.subr.mxu0 0.0
    %214 = vmatpush1.msra.mxu0 0.0
    %215 = vmatprep.subr.mxu0 0.0
    %216 = vmatpush1.msra.mxu0 0.0
    %217 = vmatprep.mubr.f32.mxu0 0.0
    %218 = vmatmul.mubr.f32.gmra.mrb[0].mxu0 %v129
    %v219 = vpop.f32.mrb[0].mxu0
    %v220 = vadd.f32 %v151, %v219
    %v221 = vpop.f32.mrb[0].mxu0
    %222 = vdwg.mxu0
    %v223 = vmax.f32 %v220, 0.0
    %v224 = vld [vmem:[#allocation5] sm:$0xff]
    %v225 = vld [vmem:[#allocation5 + $0x8] sm:$0xff]
    %v226 = vld [vmem:[#allocation5 + $0x10] sm:$0xff]
    %v227 = vld [vmem:[#allocation5 + $0x18] sm:$0xff]
    %v228 = vld [vmem:[#allocation5 + $0x20] sm:$0xff]
    %v229 = vld [vmem:[#allocation5 + $0x28] sm:$0xff]
    %v230 = vld [vmem:[#allocation5 + $0x30] sm:$0xff]
    %v231 = vld [vmem:[#allocation5 + $0x38] sm:$0xff]
    %v232 = vld [vmem:[#allocation5 + $0x40] sm:$0xff]
    %v233 = vld [vmem:[#allocation5 + $0x48] sm:$0xff]
    %v234 = vld [vmem:[#allocation5 + $0x50] sm:$0xff]
    %v235 = vld [vmem:[#allocation5 + $0x58] sm:$0xff]
    %v236 = vld [vmem:[#allocation5 + $0x60] sm:$0xff]
    %v237 = vld [vmem:[#allocation5 + $0x68] sm:$0xff]
    %v238 = vld [vmem:[#allocation5 + $0x70] sm:$0xff]
    %v239 = vld [vmem:[#allocation5 + $0x78] sm:$0xff]
    %240 = vmatprep.subr.mxu0 0.0
    %241 = vmatpush1.msra.mxu0 %v224
    %242 = vmatprep.subr.mxu0 0.0
    %243 = vmatpush1.msra.mxu0 %v225
    %244 = vmatprep.subr.mxu0 0.0
    %245 = vmatpush1.msra.mxu0 %v226
    %246 = vmatprep.subr.mxu0 0.0
    %247 = vmatpush1.msra.mxu0 %v227
    %248 = vmatprep.subr.mxu0 0.0
    %249 = vmatpush1.msra.mxu0 %v228
    %250 = vmatprep.subr.mxu0 0.0
    %251 = vmatpush1.msra.mxu0 %v229
    %252 = vmatprep.subr.mxu0 0.0
    %253 = vmatpush1.msra.mxu0 %v230
    %254 = vmatprep.subr.mxu0 0.0
    %255 = vmatpush1.msra.mxu0 %v231
    %256 = vmatprep.subr.mxu0 0.0
    %257 = vmatpush1.msra.mxu0 %v232
    %258 = vmatprep.subr.mxu0 0.0
    %259 = vmatpush1.msra.mxu0 %v233
    %260 = vmatprep.subr.mxu0 0.0
    %261 = vmatpush1.msra.mxu0 %v234
    %262 = vmatprep.subr.mxu0 0.0
    %263 = vmatpush1.msra.mxu0 %v235
    %264 = vmatprep.subr.mxu0 0.0
    %265 = vmatpush1.msra.mxu0 %v236
    %266 = vmatprep.subr.mxu0 0.0
    %267 = vmatpush1.msra.mxu0 %v237
    %268 = vmatprep.subr.mxu0 0.0
    %269 = vmatpush1.msra.mxu0 %v238
    %270 = vmatprep.subr.mxu0 0.0
    %271 = vmatpush1.msra.mxu0 %v239
    %272 = vmatprep.subr.mxu0 0.0
    %273 = vmatpush1.msra.mxu0 0.0
    %274 = vmatprep.subr.mxu0 0.0
    %275 = vmatpush1.msra.mxu0 0.0
    %276 = vmatprep.subr.mxu0 0.0
    %277 = vmatpush1.msra.mxu0 0.0
    %278 = vmatprep.subr.mxu0 0.0
    %279 = vmatpush1.msra.mxu0 0.0
    %280 = vmatprep.subr.mxu0 0.0
    %281 = vmatpush1.msra.mxu0 0.0
    %282 = vmatprep.subr.mxu0 0.0
    %283 = vmatpush1.msra.mxu0 0.0
    %284 = vmatprep.subr.mxu0 0.0
    %285 = vmatpush1.msra.mxu0 0.0
    %286 = vmatprep.subr.mxu0 0.0
    %287 = vmatpush1.msra.mxu0 0.0
    %288 = vmatprep.subr.mxu0 0.0
    %289 = vmatpush1.msra.mxu0 0.0
    %290 = vmatprep.subr.mxu0 0.0
    %291 = vmatpush1.msra.mxu0 0.0
    %292 = vmatprep.subr.mxu0 0.0
    %293 = vmatpush1.msra.mxu0 0.0
    %294 = vmatprep.subr.mxu0 0.0
    %295 = vmatpush1.msra.mxu0 0.0
    %296 = vmatprep.subr.mxu0 0.0
    %297 = vmatpush1.msra.mxu0 0.0
    %298 = vmatprep.subr.mxu0 0.0
    %299 = vmatpush1.msra.mxu0 0.0
    %300 = vmatprep.subr.mxu0 0.0
    %301 = vmatpush1.msra.mxu0 0.0
    %302 = vmatprep.subr.mxu0 0.0
    %303 = vmatpush1.msra.mxu0 0.0
    %304 = vmatprep.mubr.f32.mxu0 0.0
    %305 = vmatmul.mubr.f32.gmra.mrb[0].mxu0 %v223
    %v306 = vpop.f32.mrb[0].mxu0
    %v307 = vadd.f32 0.0, %v306
    %v308 = vpop.f32.mrb[0].mxu0
    %309 = vdwg.mxu0
    %v310 = vld [vmem:[#allocation2] sm:$0x1]
    %v312 = vlaneseq
    %v313 = vshrl.u32 %v312, 7
    %v314 = vsub.s32 0, %v313
    %v315 = vrot.slane %v310, %v314
    %v317 = vadd.f32 %v307, %v315
    %vm318 = vcmask 7168
    %319 = vst.msk [vmem:[%s6] sm:$0xff] %vm318, %v317
    // Predicated region
    $region34: #{mlp_forward.1} parent=1 // pred_check
      _
    $region35: #{mlp_forward.1} parent=1 // pred_check_branch
      %321 = sbr.rel (0) target = $region37
    $region36: #{mlp_forward.1} parent=1 // pred_region
      _
    $region37: #{mlp_forward.1} parent=1 // pred_fallthru
      _
    // Predicated region
    $region38: #{mlp_forward.1} parent=1 // pred_check
      _
    $region39: #{mlp_forward.1} parent=1 // pred_check_branch
      %323 = sbr.rel (0) target = $region41
    $region40: #{mlp_forward.1} parent=1 // pred_region
      _
    $region41: #{mlp_forward.1} parent=1 // pred_fallthru
      _
    %324 = vsyncpa [#allocation4], 1
    %325 = vsyncpa [#allocation6], 1

</llo_original>
